<compile_context>
chip_gen: v6e
topology: v6e:2x2x1
jax: 0.10.0
libtpu: 0.0.40
codegen_flags: <defaults>
</compile_context>

<pallas_src>
import functools
import math

import jax
import jax.numpy as jnp
from jax import lax
from jax.experimental import pallas as pl
from jax.experimental.pallas import tpu as pltpu

LANE = 128                        # TPU lane width (last dim)
SUBLANE = 8                       # f32 sublane height (second-to-last dim)
_LIVE_BYTES_TARGET = 64 * 1024    # ~16 f32 vregs per live activation value
_VMEM_HARD_CAP = 100 * 1024 * 1024


def _round_up(n, m):
    return ((n + m - 1) // m) * m


def _cdiv(a, b):
    return (a + b - 1) // b


def _fused_chain_kernel(*refs, layer_flags, row_block, compute_dtype):
    """refs = (x_ref, w0, b0, w1, b1, ..., o_ref).

    The layer loop is statically unrolled; `layer_flags[i] = (apply_act,
    apply_resid)` is compile-time Python.  The batch tile is processed in
    `row_block`-row sub-blocks to bound vreg live ranges (two activations are
    live across the residual add).
    """
    x_ref = refs[0]
    o_ref = refs[-1]
    wb = refs[1:-1]
    bt = x_ref.shape[0]
    n_sub = bt // row_block            # static; row_block divides bt

    def run_chain(x):
        # x: (row_block, pad_in) in compute_dtype (bf16 stays bf16 -> fast MXU
        # path); accumulation is always f32 via preferred_element_type.
        for i, (apply_act, apply_resid) in enumerate(layer_flags):
            w = wb[2 * i][...]
            b = wb[2 * i + 1][...]
            y = jnp.dot(x, w, preferred_element_type=jnp.float32)
            y = y + b.astype(jnp.float32)
            if apply_act:
                y = jnp.maximum(y, 0.0)            # torch.relu
            if apply_resid:
                # use_resnet and in_f == out_f; weight_skip is all-ones
                # (with_weight_skip=False), so x + tmp * 1 == x + tmp.
                y = y + x.astype(jnp.float32)
            x = y.astype(compute_dtype)
        return x

    if n_sub == 1:
        o_ref[...] = run_chain(x_ref[...]).astype(o_ref.dtype)
    else:
        def body(r, carry):
            start = pl.multiple_of(r * row_block, row_block)
            rows = pl.ds(start, row_block)
            o_ref[rows, :] = run_chain(x_ref[rows, :]).astype(o_ref.dtype)
            return carry
        lax.fori_loop(0, n_sub, body, 0)


def init_dense_chain_params(key, sizes, dtype=jnp.float32):
    """Deterministic init mimicking nn.Linear shapes (bias enabled).

    Weights are stored pre-transposed as (in_f, out_f); bias as (1, out_f).
    """
    params = []
    for in_f, out_f in zip(sizes, sizes[1:]):
        key, kw, kb = jax.random.split(key, 3)
        bound = 1.0 / math.sqrt(in_f)
        w = jax.random.uniform(kw, (in_f, out_f), dtype, -bound, bound)
        b = jax.random.uniform(kb, (1, out_f), dtype, -bound, bound)
        params.append((w, b))
    return params


def pad_dense_chain_params(params, *, dtype=None):
    """Zero-pad every feature dim to a multiple of 128 (min 128).

    Do this ONCE at parameter-setup time; the padded tensors feed the fused
    kernel directly on every call.  Optional `dtype` (e.g. jnp.bfloat16)
    downcasts the stored weights (halves resident VMEM, enables the bf16 MXU).
    Zero padding is exact through matmul + bias + relu + residual.
    """
    sizes = [params[0][0].shape[0]] + [w.shape[1] for w, _ in params]
    pad_f = [_round_up(max(s, LANE), LANE) for s in sizes]
    padded = []
    for i, (w, b) in enumerate(params):
        dt = jnp.dtype(dtype) if dtype is not None else w.dtype
        li, lo = w.shape
        wp = jnp.zeros((pad_f[i], pad_f[i + 1]), dt).at[:li, :lo].set(w.astype(dt))
        bp = jnp.zeros((1, pad_f[i + 1]), dt).at[:, :lo].set(
            jnp.reshape(b, (1, lo)).astype(dt))
        padded.append((wp, bp))
    return tuple(padded)


def dense_chain_net_forward(x, padded_params, *, feature_sizes, use_resnet=True,
                            batch_tile=256, trim_output=True):
    """Fused forward of DenseChainNet (act=relu, no batch_norm, no weight_skip).

    x:              (B, in_f) activations (f32 or bf16; bf16 uses the fast MXU).
    padded_params:  output of pad_dense_chain_params (tuple of (w, b) pairs).
    feature_sizes:  ORIGINAL (unpadded) layer widths (in_f, h1, ..., out_f);
                    residual eligibility is decided on these, never on the
                    padded shapes (which all round up to 128).
    batch_tile:     rows per DMA'd batch tile (default 256 matches the
                    v6e/v7x MXU M dimension; rounded to sublane multiples).
    """
    n_layers = len(padded_params)
    assert len(feature_sizes) == n_layers + 1, "feature_sizes must match params"
    in_f, out_f = feature_sizes[0], feature_sizes[-1]
    assert x.shape[1] == in_f

    pad_f = [padded_params[0][0].shape[0]] + [w.shape[1] for w, _ in padded_params]
    layer_flags = tuple(
        (i < n_layers - 1, use_resnet and feature_sizes[i] == feature_sizes[i + 1])
        for i in range(n_layers))

    compute_dtype = x.dtype
    itemsize = jnp.dtype(compute_dtype).itemsize
    sub = max(SUBLANE, 32 // itemsize)      # 8 for f32, 16 for bf16

    # ---- batch tiling (no inflation: pad to n_tiles * ceil-per-tile) --------
    B = x.shape[0]
    Bp8 = _round_up(max(B, 1), sub)
    bt = _round_up(min(max(batch_tile, sub), Bp8), sub)
    n_tiles = _cdiv(Bp8, bt)
    if n_tiles == 1 and Bp8 >= 2 * 256:
        n_tiles = 2           # give ("parallel",) two tiles to split on v7x
    bt = _round_up(_cdiv(Bp8, n_tiles), sub)
    n_tiles = _cdiv(Bp8, bt)
    Bp = n_tiles * bt

    # Row sub-block inside the kernel: keep one live activation near 16 f32
    # vregs so the residual chain never spills.  gcd keeps it a divisor of bt.
    max_pad_f = max(pad_f)
    rb = max(sub, min(256, (_LIVE_BYTES_TARGET // (4 * max_pad_f)) // sub * sub))
    row_block = math.gcd(bt, rb)

    # ---- pad x (zero rows/lanes are exact through the chain) ----------------
    xp = jnp.zeros((Bp, pad_f[0]), compute_dtype).at[:B, :in_f].set(x)

    # ---- specs: x/out streamed per batch tile; weights VMEM-resident --------
    grid = (n_tiles,)
    in_specs = [pl.BlockSpec((bt, pad_f[0]), lambda i: (i, 0))]
    flat_wb = []
    for wp, bp in padded_params:
        # Constant block index -> weights/biases stay resident in VMEM across
        # all batch-grid steps (no per-step re-DMA).
        # NOTE: left at default buffering; pl.Buffered(1) would halve the
        # resident footprint for these constant-index blocks but pipeline_mode
        # support varies across Pallas versions, so we keep the robust default.
        in_specs.append(pl.BlockSpec(wp.shape, lambda i: (0, 0)))
        in_specs.append(pl.BlockSpec(bp.shape, lambda i: (0, 0)))
        flat_wb.extend([wp, bp])
    out_specs = pl.BlockSpec((bt, pad_f[-1]), lambda i: (i, 0))

    # ---- VMEM budget / cost hint --------------------------------------------
    w_bytes = sum(int(a.size) * a.dtype.itemsize for a in flat_wb)
    tile_bytes = bt * (pad_f[0] + pad_f[-1]) * itemsize
    vmem_needed = 2 * (tile_bytes + w_bytes)    # conservatively 2 buffers each
    if vmem_needed > _VMEM_HARD_CAP:
        # TODO(synk): streamed-weight fallback (extra grid axis over layers or
        # emit_pipeline over weight tiles) for chains whose resident weights do
        # not fit VMEM (v7x: 64 MiB).  All-resident layout only for now.
        raise NotImplementedError(
            f"padded weights need ~{vmem_needed >> 20} MiB VMEM; "
            "streamed-weight fallback not implemented")
    vmem_limit = None
    if vmem_needed > 12 * 1024 * 1024:          # approaching v5e's 16 MiB default
        vmem_limit = min(int(vmem_needed * 1.25) + (1 << 20), _VMEM_HARD_CAP)

    flops = 2 * Bp * sum(pad_f[i] * pad_f[i + 1] for i in range(n_layers))
    cost = pl.CostEstimate(
        flops=flops, transcendentals=0,
        bytes_accessed=Bp * (pad_f[0] + pad_f[-1]) * itemsize + w_bytes)

    kernel = functools.partial(
        _fused_chain_kernel, layer_flags=layer_flags, row_block=row_block,
        compute_dtype=compute_dtype)

    out_padded = pl.pallas_call(
        kernel,
        out_shape=jax.ShapeDtypeStruct((Bp, pad_f[-1]), compute_dtype),
        grid=grid,
        in_specs=in_specs,
        out_specs=out_specs,
        compiler_params=pltpu.CompilerParams(
            dimension_semantics=("parallel",),
            vmem_limit_bytes=vmem_limit),
        cost_estimate=cost,
    )(xp, *flat_wb)

    if trim_output:
        return out_padded[:B, :out_f]
    # Caller tolerates 128-padded lanes: skip the non-lane-dense final slice.
    return out_padded[:B]


def _reference_forward(x, params, *, use_resnet=True):
    """Pure-JAX f32 reference matching the PyTorch module."""
    n_layers = len(params)
    for i, (w, b) in enumerate(params):
        in_f, out_f = w.shape
        tmp = x @ w + b[0]
        if i < n_layers - 1:
            tmp = jnp.maximum(tmp, 0.0)
        if use_resnet and in_f == out_f:
            x = x + tmp
        else:
            x = tmp
    return x


# TODO(synk): with_batch_norm=True (BatchNorm1d) and with_weight_skip=True
# variants of the module are not implemented; default config only.

if __name__ == "__main__":
    key = jax.random.PRNGKey(0)
    sizes = [32, 32, 32, 16]    # two residual-eligible layers, then a projection

    key, kx1, kx2, kp = jax.random.split(key, 4)
    params = init_dense_chain_params(kp, sizes)

    fwd = jax.jit(functools.partial(
        dense_chain_net_forward, feature_sizes=tuple(sizes),
        use_resnet=True, batch_tile=256))

    # --- case 1: f32, tiny batch (single tile, straight-line kernel body) ----
    batch1 = 8
    x1 = jax.random.normal(kx1, (batch1, sizes[0]), jnp.float32)
    padded_f32 = pad_dense_chain_params(params)                  # pad ONCE
    out1 = jax.block_until_ready(fwd(x1, padded_f32))
    ref1 = _reference_forward(x1, params)
    assert out1.shape == (batch1, sizes[-1])
    assert jnp.allclose(out1, ref1, atol=1e-4, rtol=1e-4), "f32 mismatch"

    # --- case 2: bf16 params/activations; batch exercises the multi-tile grid
    # and the in-kernel row sub-block loop -------------------------------------
    batch2 = 300
    x2 = jax.random.normal(kx2, (batch2, sizes[0]), jnp.float32).astype(jnp.bfloat16)
    padded_bf16 = pad_dense_chain_params(params, dtype=jnp.bfloat16)
    out2 = jax.block_until_ready(fwd(x2, padded_bf16))
    params_bf = [(w.astype(jnp.bfloat16).astype(jnp.float32),
                  b.astype(jnp.bfloat16).astype(jnp.float32)) for w, b in params]
    ref2 = _reference_forward(x2.astype(jnp.float32), params_bf)
    assert out2.shape == (batch2, sizes[-1])
    assert out2.dtype == jnp.bfloat16
    assert jnp.allclose(out2.astype(jnp.float32), ref2,
                        atol=1e-1, rtol=5e-2), "bf16 mismatch"

    print("KERNEL_OK")
</pallas_src>

<mosaic_0001>
module attributes {stable_mosaic.version = 11 : i64} {
  func.func @_fused_chain_kernel(%arg0: i32, %arg1: memref<8x128xf32, #tpu.memory_space<vmem>>, %arg2: memref<128x128xf32, #tpu.memory_space<vmem>>, %arg3: memref<1x128xf32, #tpu.memory_space<vmem>>, %arg4: memref<128x128xf32, #tpu.memory_space<vmem>>, %arg5: memref<1x128xf32, #tpu.memory_space<vmem>>, %arg6: memref<128x128xf32, #tpu.memory_space<vmem>>, %arg7: memref<1x128xf32, #tpu.memory_space<vmem>>, %arg8: memref<8x128xf32, #tpu.memory_space<vmem>>) attributes {dimension_semantics = [#tpu.dimension_semantics<parallel>], iteration_bounds = array<i64: 1>, scalar_prefetch = 0 : i64, scratch_operands = 0 : i64, tpu.core_type = #tpu.core_type<tc>, window_params = [{transform_indices = @transform_0, window_bounds = array<i64: 8, 128>}, {pipeline_mode = #tpu.pipeline_mode<synchronous>, transform_indices = @transform_1, window_bounds = array<i64: 128, 128>}, {pipeline_mode = #tpu.pipeline_mode<synchronous>, transform_indices = @transform_2, window_bounds = array<i64: 1, 128>}, {pipeline_mode = #tpu.pipeline_mode<synchronous>, transform_indices = @transform_3, window_bounds = array<i64: 128, 128>}, {pipeline_mode = #tpu.pipeline_mode<synchronous>, transform_indices = @transform_4, window_bounds = array<i64: 1, 128>}, {pipeline_mode = #tpu.pipeline_mode<synchronous>, transform_indices = @transform_5, window_bounds = array<i64: 128, 128>}, {pipeline_mode = #tpu.pipeline_mode<synchronous>, transform_indices = @transform_6, window_bounds = array<i64: 1, 128>}, {transform_indices = @transform_7, window_bounds = array<i64: 8, 128>}]} {
    %c0 = arith.constant 0 : index
    %c0_0 = arith.constant 0 : index
    %0 = vector.load %arg1[%c0, %c0_0] : memref<8x128xf32, #tpu.memory_space<vmem>>, vector<8x128xf32>
    %c0_1 = arith.constant 0 : index
    %c0_2 = arith.constant 0 : index
    %1 = vector.load %arg2[%c0_1, %c0_2] : memref<128x128xf32, #tpu.memory_space<vmem>>, vector<128x128xf32>
    %c0_3 = arith.constant 0 : index
    %c0_4 = arith.constant 0 : index
    %2 = vector.load %arg3[%c0_3, %c0_4] : memref<1x128xf32, #tpu.memory_space<vmem>>, vector<1x128xf32>
    %cst = arith.constant dense<0.000000e+00> : vector<8x128xf32>
    %3 = tpu.matmul %0, %1, %cst {dimension_numbers = #tpu.dot_dimension_numbers<[1], [0], [0], [1], [0, 0, 1, 1], [], []>} : vector<8x128xf32>, vector<128x128xf32>, vector<8x128xf32> -> vector<8x128xf32>
    %4 = vector.broadcast %2 : vector<1x128xf32> to vector<8x128xf32>
    %5 = arith.addf %3, %4 : vector<8x128xf32>
    %cst_5 = arith.constant 0.000000e+00 : f32
    %6 = vector.broadcast %cst_5 : f32 to vector<8x128xf32>
    %7 = arith.maximumf %5, %6 : vector<8x128xf32>
    %8 = arith.addf %7, %0 : vector<8x128xf32>
    %c0_6 = arith.constant 0 : index
    %c0_7 = arith.constant 0 : index
    %9 = vector.load %arg4[%c0_6, %c0_7] : memref<128x128xf32, #tpu.memory_space<vmem>>, vector<128x128xf32>
    %c0_8 = arith.constant 0 : index
    %c0_9 = arith.constant 0 : index
    %10 = vector.load %arg5[%c0_8, %c0_9] : memref<1x128xf32, #tpu.memory_space<vmem>>, vector<1x128xf32>
    %cst_10 = arith.constant dense<0.000000e+00> : vector<8x128xf32>
    %11 = tpu.matmul %8, %9, %cst_10 {dimension_numbers = #tpu.dot_dimension_numbers<[1], [0], [0], [1], [0, 0, 1, 1], [], []>} : vector<8x128xf32>, vector<128x128xf32>, vector<8x128xf32> -> vector<8x128xf32>
    %12 = vector.broadcast %10 : vector<1x128xf32> to vector<8x128xf32>
    %13 = arith.addf %11, %12 : vector<8x128xf32>
    %cst_11 = arith.constant 0.000000e+00 : f32
    %14 = vector.broadcast %cst_11 : f32 to vector<8x128xf32>
    %15 = arith.maximumf %13, %14 : vector<8x128xf32>
    %16 = arith.addf %15, %8 : vector<8x128xf32>
    %c0_12 = arith.constant 0 : index
    %c0_13 = arith.constant 0 : index
    %17 = vector.load %arg6[%c0_12, %c0_13] : memref<128x128xf32, #tpu.memory_space<vmem>>, vector<128x128xf32>
    %c0_14 = arith.constant 0 : index
    %c0_15 = arith.constant 0 : index
    %18 = vector.load %arg7[%c0_14, %c0_15] : memref<1x128xf32, #tpu.memory_space<vmem>>, vector<1x128xf32>
    %cst_16 = arith.constant dense<0.000000e+00> : vector<8x128xf32>
    %19 = tpu.matmul %16, %17, %cst_16 {dimension_numbers = #tpu.dot_dimension_numbers<[1], [0], [0], [1], [0, 0, 1, 1], [], []>} : vector<8x128xf32>, vector<128x128xf32>, vector<8x128xf32> -> vector<8x128xf32>
    %20 = vector.broadcast %18 : vector<1x128xf32> to vector<8x128xf32>
    %21 = arith.addf %19, %20 : vector<8x128xf32>
    %c0_17 = arith.constant 0 : index
    %c0_18 = arith.constant 0 : index
    %22 = vector.load %arg8[%c0_17, %c0_18] : memref<8x128xf32, #tpu.memory_space<vmem>>, vector<8x128xf32>
    tpu.vector_store %arg8[%c0_17, %c0_18], %21 {strides = array<i32>} : memref<8x128xf32, #tpu.memory_space<vmem>>, vector<8x128xf32>,
    return
  }
  func.func @transform_0(%arg0: i32) -> (i32, i32) {
    %c0_i32 = arith.constant 0 : i32
    %c0_i32_0 = arith.constant 0 : i32
    return %arg0, %c0_i32 : i32, i32
  }
  func.func @transform_1(%arg0: i32) -> (i32, i32) {
    %c0_i32 = arith.constant 0 : i32
    %c0_i32_0 = arith.constant 0 : i32
    %c0_i32_1 = arith.constant 0 : i32
    return %c0_i32, %c0_i32_0 : i32, i32
  }
  func.func @transform_2(%arg0: i32) -> (i32, i32) {
    %c0_i32 = arith.constant 0 : i32
    %c0_i32_0 = arith.constant 0 : i32
    %c0_i32_1 = arith.constant 0 : i32
    return %c0_i32, %c0_i32_0 : i32, i32
  }
  func.func @transform_3(%arg0: i32) -> (i32, i32) {
    %c0_i32 = arith.constant 0 : i32
    %c0_i32_0 = arith.constant 0 : i32
    %c0_i32_1 = arith.constant 0 : i32
    return %c0_i32, %c0_i32_0 : i32, i32
  }
  func.func @transform_4(%arg0: i32) -> (i32, i32) {
    %c0_i32 = arith.constant 0 : i32
    %c0_i32_0 = arith.constant 0 : i32
    %c0_i32_1 = arith.constant 0 : i32
    return %c0_i32, %c0_i32_0 : i32, i32
  }
  func.func @transform_5(%arg0: i32) -> (i32, i32) {
    %c0_i32 = arith.constant 0 : i32
    %c0_i32_0 = arith.constant 0 : i32
    %c0_i32_1 = arith.constant 0 : i32
    return %c0_i32, %c0_i32_0 : i32, i32
  }
  func.func @transform_6(%arg0: i32) -> (i32, i32) {
    %c0_i32 = arith.constant 0 : i32
    %c0_i32_0 = arith.constant 0 : i32
    %c0_i32_1 = arith.constant 0 : i32
    return %c0_i32, %c0_i32_0 : i32, i32
  }
  func.func @transform_7(%arg0: i32) -> (i32, i32) {
    %c0_i32 = arith.constant 0 : i32
    %c0_i32_0 = arith.constant 0 : i32
    return %arg0, %c0_i32 : i32, i32
  }
}

</mosaic_0001>

<llo_original>
// kernel: dense_chain_net_forward.1
$region0: #{dense_chain_net_forward.1}
  #allocation0 [shape = 'u32[]', space=smem, size = 0x4, offset = 0x4, fixed_abs, tag = 'smem constant byte address 0x4 - core index']
  #allocation1 [shape = 'u32[144,128]{1,0:T(1,128)}', space=vmem, size = 0x12000, scoped, tag = 'internal scratch']
  %s0 = inlined_call_operand.vmem [shape: f32[8,128], index: 0, kind: input, shape index: {}]
  %s1 = inlined_call_operand.hbm [shape: f32[128,128], index: 1, kind: input, shape index: {}]
  %s2 = inlined_call_operand.vmem [shape: f32[1,128], index: 2, kind: input, shape index: {}]
  %s3 = inlined_call_operand.hbm [shape: f32[128,128], index: 3, kind: input, shape index: {}]
  %s4 = inlined_call_operand.vmem [shape: f32[1,128], index: 4, kind: input, shape index: {}]
  %s5 = inlined_call_operand.hbm [shape: f32[128,128], index: 5, kind: input, shape index: {}]
  %s6 = inlined_call_operand.vmem [shape: f32[1,128], index: 6, kind: input, shape index: {}]
  %s7 = inlined_call_operand.hbm [shape: f32[8,128], index: 7, kind: output, shape index: {}]
  %s8 = sld [smem:[#allocation0]]
  $region50: #{dense_chain_net_forward.1} parent=0
    _
  %s10 = ssub.s32 1, %s8
  %s11 = scalar_select 0, %s10, %s8
  $region1: #{dense_chain_net_forward.1} parent=0
    #allocation2 [shape = 'u8[65536]{0}', space=vmem, size = 0x10000, scoped, tag = 'input window, operand 1, single buffered']
    #allocation3 [shape = 's32[1]{0}', space=sflag, size = 0x4, scoped, tag = 'scoped memory for dense_chain_net_forward.1']
    #allocation4 [shape = 's32[1]{0}', space=sflag, size = 0x4, scoped, tag = 'scoped memory for dense_chain_net_forward.1']
    #allocation5 [shape = 'u8[65536]{0}', space=vmem, size = 0x10000, scoped, tag = 'input window, operand 3, single buffered']
    #allocation6 [shape = 's32[1]{0}', space=sflag, size = 0x4, scoped, tag = 'scoped memory for dense_chain_net_forward.1']
    #allocation7 [shape = 'u8[65536]{0}', space=vmem, size = 0x10000, scoped, tag = 'input window, operand 5, single buffered']
    #allocation8 [shape = 'u8[4096]{0}', space=vmem, size = 0x1000, scoped, tag = 'output window, operand 0, single buffered']
    %12 = vsyncpa [#allocation3], 0
    %13 = vsyncpa [#allocation6], 0
    %14 = vsyncpa [#allocation4], 0
    // Predicated region
    $region2: #{dense_chain_net_forward.1} parent=1 // pred_check
      _
    $region3: #{dense_chain_net_forward.1} parent=1 // pred_check_branch
      %16 = sbr.rel (0) target = $region5
    $region4: #{dense_chain_net_forward.1} parent=1 // pred_region
      _
    $region5: #{dense_chain_net_forward.1} parent=1 // pred_fallthru
      _
    // Predicated region
    $region6: #{dense_chain_net_forward.1} parent=1 // pred_check
      _
    $region7: #{dense_chain_net_forward.1} parent=1 // pred_check_branch
      %18 = sbr.rel (0) target = $region9
    $region8: #{dense_chain_net_forward.1} parent=1 // pred_region
      %s20 = ssub.s32 2048, 2048
      %21 = vsyncadd [#allocation3], %s20
      %s22 = sshll.u32 [#allocation2], 4
      %s23 = int_to_ptr.vmem [resolvable:$true] %s22
      %28 = dma.hbm_to_vmem [thread:$0]  %s1, 2048, %s23, [#allocation3], 128, 128, 8
    $region9: #{dense_chain_net_forward.1} parent=1 // pred_fallthru
      _
    // Predicated region
    $region10: #{dense_chain_net_forward.1} parent=1 // pred_check
      _
    $region11: #{dense_chain_net_forward.1} parent=1 // pred_check_branch
      %30 = sbr.rel (0) target = $region13
    $region12: #{dense_chain_net_forward.1} parent=1 // pred_region
      _
    $region13: #{dense_chain_net_forward.1} parent=1 // pred_fallthru
      _
    // Predicated region
    $region14: #{dense_chain_net_forward.1} parent=1 // pred_check
      _
    $region15: #{dense_chain_net_forward.1} parent=1 // pred_check_branch
      %32 = sbr.rel (0) target = $region17
    $region16: #{dense_chain_net_forward.1} parent=1 // pred_region
      %s34 = ssub.s32 2048, 2048
      %35 = vsyncadd [#allocation6], %s34
      %s36 = sshll.u32 [#allocation5], 4
      %s37 = int_to_ptr.vmem [resolvable:$true] %s36
      %42 = dma.hbm_to_vmem [thread:$0]  %s3, 2048, %s37, [#allocation6], 128, 128, 8
    $region17: #{dense_chain_net_forward.1} parent=1 // pred_fallthru
      _
    // Predicated region
    $region18: #{dense_chain_net_forward.1} parent=1 // pred_check
      _
    $region19: #{dense_chain_net_forward.1} parent=1 // pred_check_branch
      %44 = sbr.rel (0) target = $region21
    $region20: #{dense_chain_net_forward.1} parent=1 // pred_region
      _
    $region21: #{dense_chain_net_forward.1} parent=1 // pred_fallthru
      _
    // Predicated region
    $region22: #{dense_chain_net_forward.1} parent=1 // pred_check
      _
    $region23: #{dense_chain_net_forward.1} parent=1 // pred_check_branch
      %46 = sbr.rel (0) target = $region25
    $region24: #{dense_chain_net_forward.1} parent=1 // pred_region
      %s48 = ssub.s32 2048, 2048
      %49 = vsyncadd [#allocation6], %s48
      %s50 = sshll.u32 [#allocation7], 4
      %s51 = int_to_ptr.vmem [resolvable:$true] %s50
      %56 = dma.hbm_to_vmem [thread:$0]  %s5, 2048, %s51, [#allocation6], 128, 128, 8
    $region25: #{dense_chain_net_forward.1} parent=1 // pred_fallthru
      _
    // Predicated region
    $region26: #{dense_chain_net_forward.1} parent=1 // pred_check
      _
    $region27: #{dense_chain_net_forward.1} parent=1 // pred_check_branch
      %58 = sbr.rel (0) target = $region29
    $region28: #{dense_chain_net_forward.1} parent=1 // pred_region
      _
    $region29: #{dense_chain_net_forward.1} parent=1 // pred_fallthru
      _
    // Predicated region
    $region30: #{dense_chain_net_forward.1} parent=1 // pred_check
      _
    $region31: #{dense_chain_net_forward.1} parent=1 // pred_check_branch
      %60 = sbr.rel (0) target = $region33
    $region32: #{dense_chain_net_forward.1} parent=1 // pred_region
      %61 = dma.done [#allocation3], 2048
    $region33: #{dense_chain_net_forward.1} parent=1 // pred_fallthru
      _
    // Predicated region
    $region34: #{dense_chain_net_forward.1} parent=1 // pred_check
      _
    $region35: #{dense_chain_net_forward.1} parent=1 // pred_check_branch
      %63 = sbr.rel (0) target = $region37
    $region36: #{dense_chain_net_forward.1} parent=1 // pred_region
      %64 = dma.done [#allocation6], 2048
    $region37: #{dense_chain_net_forward.1} parent=1 // pred_fallthru
      _
    // Predicated region
    $region38: #{dense_chain_net_forward.1} parent=1 // pred_check
      _
    $region39: #{dense_chain_net_forward.1} parent=1 // pred_check_branch
      %66 = sbr.rel (0) target = $region41
    $region40: #{dense_chain_net_forward.1} parent=1 // pred_region
      %67 = dma.done [#allocation6], 2048
    $region41: #{dense_chain_net_forward.1} parent=1 // pred_fallthru
      _
    %v68 = vld [vmem:[%s0] sm:$0xff]
    %v69 = vld [vmem:[#allocation2] sm:$0xff]
    %v70 = vld [vmem:[#allocation2 + $0x8] sm:$0xff]
    %v71 = vld [vmem:[#allocation2 + $0x10] sm:$0xff]
    %v72 = vld [vmem:[#allocation2 + $0x18] sm:$0xff]
    %v73 = vld [vmem:[#allocation2 + $0x20] sm:$0xff]
    %v74 = vld [vmem:[#allocation2 + $0x28] sm:$0xff]
    %v75 = vld [vmem:[#allocation2 + $0x30] sm:$0xff]
    %v76 = vld [vmem:[#allocation2 + $0x38] sm:$0xff]
    %v77 = vld [vmem:[#allocation2 + $0x40] sm:$0xff]
    %v78 = vld [vmem:[#allocation2 + $0x48] sm:$0xff]
    %v79 = vld [vmem:[#allocation2 + $0x50] sm:$0xff]
    %v80 = vld [vmem:[#allocation2 + $0x58] sm:$0xff]
    %v81 = vld [vmem:[#allocation2 + $0x60] sm:$0xff]
    %v82 = vld [vmem:[#allocation2 + $0x68] sm:$0xff]
    %v83 = vld [vmem:[#allocation2 + $0x70] sm:$0xff]
    %v84 = vld [vmem:[#allocation2 + $0x78] sm:$0xff]
    %v85 = vld [vmem:[%s2] sm:$0x1]
    %v87 = vlaneseq
    %v88 = vshrl.u32 %v87, 7
    %v89 = vsub.s32 0, %v88
    %v90 = vrot.slane %v85, %v89
    %92 = vmatprep.subr.mxu0 0.0
    %93 = vmatpush1.msra.mxu0 %v84
    %94 = vmatprep.subr.mxu0 0.0
    %95 = vmatpush1.msra.mxu0 %v83
    %96 = vmatprep.subr.mxu0 0.0
    %97 = vmatpush1.msra.mxu0 %v82
    %98 = vmatprep.subr.mxu0 0.0
    %99 = vmatpush1.msra.mxu0 %v81
    %100 = vmatprep.subr.mxu0 0.0
    %101 = vmatpush1.msra.mxu0 %v80
    %102 = vmatprep.subr.mxu0 0.0
    %103 = vmatpush1.msra.mxu0 %v79
    %104 = vmatprep.subr.mxu0 0.0
    %105 = vmatpush1.msra.mxu0 %v78
    %106 = vmatprep.subr.mxu0 0.0
    %107 = vmatpush1.msra.mxu0 %v77
    %108 = vmatprep.subr.mxu0 0.0
    %109 = vmatpush1.msra.mxu0 %v76
    %110 = vmatprep.subr.mxu0 0.0
    %111 = vmatpush1.msra.mxu0 %v75
    %112 = vmatprep.subr.mxu0 0.0
    %113 = vmatpush1.msra.mxu0 %v74
    %114 = vmatprep.subr.mxu0 0.0
    %115 = vmatpush1.msra.mxu0 %v73
    %116 = vmatprep.subr.mxu0 0.0
    %117 = vmatpush1.msra.mxu0 %v72
    %118 = vmatprep.subr.mxu0 0.0
    %119 = vmatpush1.msra.mxu0 %v71
    %120 = vmatprep.subr.mxu0 0.0
    %121 = vmatpush1.msra.mxu0 %v70
    %122 = vmatprep.subr.mxu0 0.0
    %123 = vmatpush1.msra.mxu0 %v69
    %124 = vmatprep.subr.mxu0 0.0
    %125 = vmatpush2.msra.mxu0 0.0
    %126 = vmatprep.subr.mxu0 0.0
    %127 = vmatpush2.msra.mxu0 0.0
    %128 = vmatprep.subr.mxu0 0.0
    %129 = vmatpush2.msra.mxu0 0.0
    %130 = vmatprep.subr.mxu0 0.0
    %131 = vmatpush2.msra.mxu0 0.0
    %132 = vmatprep.subr.mxu0 0.0
    %133 = vmatpush2.msra.mxu0 0.0
    %134 = vmatprep.subr.mxu0 0.0
    %135 = vmatpush2.msra.mxu0 0.0
    %136 = vmatprep.subr.mxu0 0.0
    %137 = vmatpush2.msra.mxu0 0.0
    %138 = vmatprep.subr.mxu0 0.0
    %139 = vmatpush2.msra.mxu0 0.0
    %140 = vmatprep.subr.mxu0 0.0
    %141 = vmatpush2.msra.mxu0 0.0
    %142 = vmatprep.subr.mxu0 0.0
    %143 = vmatpush2.msra.mxu0 0.0
    %144 = vmatprep.subr.mxu0 0.0
    %145 = vmatpush2.msra.mxu0 0.0
    %146 = vmatprep.subr.mxu0 0.0
    %147 = vmatpush2.msra.mxu0 0.0
    %148 = vmatprep.subr.mxu0 0.0
    %149 = vmatpush2.msra.mxu0 0.0
    %150 = vmatprep.subr.mxu0 0.0
    %151 = vmatpush2.msra.mxu0 0.0
    %152 = vmatprep.subr.mxu0 0.0
    %153 = vmatpush2.msra.mxu0 0.0
    %154 = vmatprep.subr.mxu0 0.0
    %155 = vmatpush2.msra.mxu0 0.0
    %156 = vmatprep.mubr.f32.mxu0 0.0
    %157 = vmatmul.mubr.f32.gmra.mxu0 %v68
    %v158 = vpop.f32.mrf.mxu0
    %v159 = vadd.f32 %v90, %v158
    %v160 = vpop.f32.mrf.mxu0
    %161 = vdwg.mxu0
    %v162 = vmax.f32 %v159, 0.0
    %v163 = vadd.f32 %v162, %v68
    %v164 = vld [vmem:[#allocation5] sm:$0xff]
    %v165 = vld [vmem:[#allocation5 + $0x8] sm:$0xff]
    %v166 = vld [vmem:[#allocation5 + $0x10] sm:$0xff]
    %v167 = vld [vmem:[#allocation5 + $0x18] sm:$0xff]
    %v168 = vld [vmem:[#allocation5 + $0x20] sm:$0xff]
    %v169 = vld [vmem:[#allocation5 + $0x28] sm:$0xff]
    %v170 = vld [vmem:[#allocation5 + $0x30] sm:$0xff]
    %v171 = vld [vmem:[#allocation5 + $0x38] sm:$0xff]
    %v172 = vld [vmem:[#allocation5 + $0x40] sm:$0xff]
    %v173 = vld [vmem:[#allocation5 + $0x48] sm:$0xff]
    %v174 = vld [vmem:[#allocation5 + $0x50] sm:$0xff]
    %v175 = vld [vmem:[#allocation5 + $0x58] sm:$0xff]
    %v176 = vld [vmem:[#allocation5 + $0x60] sm:$0xff]
    %v177 = vld [vmem:[#allocation5 + $0x68] sm:$0xff]
    %v178 = vld [vmem:[#allocation5 + $0x70] sm:$0xff]
    %v179 = vld [vmem:[#allocation5 + $0x78] sm:$0xff]
    %v180 = vld [vmem:[%s4] sm:$0x1]
    %v182 = vlaneseq
    %v183 = vshrl.u32 %v182, 7
    %v184 = vsub.s32 0, %v183
    %v185 = vrot.slane %v180, %v184
    %187 = vmatprep.subr.mxu0 0.0
    %188 = vmatpush1.msra.mxu0 %v179
    %189 = vmatprep.subr.mxu0 0.0
    %190 = vmatpush1.msra.mxu0 %v178
    %191 = vmatprep.subr.mxu0 0.0
    %192 = vmatpush1.msra.mxu0 %v177
    %193 = vmatprep.subr.mxu0 0.0
    %194 = vmatpush1.msra.mxu0 %v176
    %195 = vmatprep.subr.mxu0 0.0
    %196 = vmatpush1.msra.mxu0 %v175
    %197 = vmatprep.subr.mxu0 0.0
    %198 = vmatpush1.msra.mxu0 %v174
    %199 = vmatprep.subr.mxu0 0.0
    %200 = vmatpush1.msra.mxu0 %v173
    %201 = vmatprep.subr.mxu0 0.0
    %202 = vmatpush1.msra.mxu0 %v172
    %203 = vmatprep.subr.mxu0 0.0
    %204 = vmatpush1.msra.mxu0 %v171
    %205 = vmatprep.subr.mxu0 0.0
    %206 = vmatpush1.msra.mxu0 %v170
    %207 = vmatprep.subr.mxu0 0.0
    %208 = vmatpush1.msra.mxu0 %v169
    %209 = vmatprep.subr.mxu0 0.0
    %210 = vmatpush1.msra.mxu0 %v168
    %211 = vmatprep.subr.mxu0 0.0
    %212 = vmatpush1.msra.mxu0 %v167
    %213 = vmatprep.subr.mxu0 0.0
    %214 = vmatpush1.msra.mxu0 %v166
    %215 = vmatprep.subr.mxu0 0.0
    %216 = vmatpush1.msra.mxu0 %v165
    %217 = vmatprep.subr.mxu0 0.0
    %218 = vmatpush1.msra.mxu0 %v164
    %219 = vmatprep.subr.mxu0 0.0
    %220 = vmatpush2.msra.mxu0 0.0
    %221 = vmatprep.subr.mxu0 0.0
    %222 = vmatpush2.msra.mxu0 0.0
    %223 = vmatprep.subr.mxu0 0.0
    %224 = vmatpush2.msra.mxu0 0.0
    %225 = vmatprep.subr.mxu0 0.0
    %226 = vmatpush2.msra.mxu0 0.0
    %227 = vmatprep.subr.mxu0 0.0
    %228 = vmatpush2.msra.mxu0 0.0
    %229 = vmatprep.subr.mxu0 0.0
    %230 = vmatpush2.msra.mxu0 0.0
    %231 = vmatprep.subr.mxu0 0.0
    %232 = vmatpush2.msra.mxu0 0.0
    %233 = vmatprep.subr.mxu0 0.0
    %234 = vmatpush2.msra.mxu0 0.0
    %235 = vmatprep.subr.mxu0 0.0
    %236 = vmatpush2.msra.mxu0 0.0
    %237 = vmatprep.subr.mxu0 0.0
    %238 = vmatpush2.msra.mxu0 0.0
    %239 = vmatprep.subr.mxu0 0.0
    %240 = vmatpush2.msra.mxu0 0.0
    %241 = vmatprep.subr.mxu0 0.0
    %242 = vmatpush2.msra.mxu0 0.0
    %243 = vmatprep.subr.mxu0 0.0
    %244 = vmatpush2.msra.mxu0 0.0
    %245 = vmatprep.subr.mxu0 0.0
    %246 = vmatpush2.msra.mxu0 0.0
    %247 = vmatprep.subr.mxu0 0.0
    %248 = vmatpush2.msra.mxu0 0.0
    %249 = vmatprep.subr.mxu0 0.0
    %250 = vmatpush2.msra.mxu0 0.0
    %251 = vmatprep.mubr.f32.mxu0 0.0
    %252 = vmatmul.mubr.f32.gmra.mxu0 %v163
    %v253 = vpop.f32.mrf.mxu0
    %v254 = vadd.f32 %v185, %v253
    %v255 = vpop.f32.mrf.mxu0
    %256 = vdwg.mxu0
    %v257 = vmax.f32 %v254, 0.0
    %v258 = vadd.f32 %v257, %v163
    %v259 = vld [vmem:[#allocation7] sm:$0xff]
    %v260 = vld [vmem:[#allocation7 + $0x8] sm:$0xff]
    %v261 = vld [vmem:[#allocation7 + $0x10] sm:$0xff]
    %v262 = vld [vmem:[#allocation7 + $0x18] sm:$0xff]
    %v263 = vld [vmem:[#allocation7 + $0x20] sm:$0xff]
    %v264 = vld [vmem:[#allocation7 + $0x28] sm:$0xff]
    %v265 = vld [vmem:[#allocation7 + $0x30] sm:$0xff]
    %v266 = vld [vmem:[#allocation7 + $0x38] sm:$0xff]
    %v267 = vld [vmem:[#allocation7 + $0x40] sm:$0xff]
    %v268 = vld [vmem:[#allocation7 + $0x48] sm:$0xff]
    %v269 = vld [vmem:[#allocation7 + $0x50] sm:$0xff]
    %v270 = vld [vmem:[#allocation7 + $0x58] sm:$0xff]
    %v271 = vld [vmem:[#allocation7 + $0x60] sm:$0xff]
    %v272 = vld [vmem:[#allocation7 + $0x68] sm:$0xff]
    %v273 = vld [vmem:[#allocation7 + $0x70] sm:$0xff]
    %v274 = vld [vmem:[#allocation7 + $0x78] sm:$0xff]
    %v275 = vld [vmem:[%s6] sm:$0x1]
    %v277 = vlaneseq
    %v278 = vshrl.u32 %v277, 7
    %v279 = vsub.s32 0, %v278
    %v280 = vrot.slane %v275, %v279
    %282 = vmatprep.subr.mxu0 0.0
    %283 = vmatpush1.msra.mxu0 %v274
    %284 = vmatprep.subr.mxu0 0.0
    %285 = vmatpush1.msra.mxu0 %v273
    %286 = vmatprep.subr.mxu0 0.0
    %287 = vmatpush1.msra.mxu0 %v272
    %288 = vmatprep.subr.mxu0 0.0
    %289 = vmatpush1.msra.mxu0 %v271
    %290 = vmatprep.subr.mxu0 0.0
    %291 = vmatpush1.msra.mxu0 %v270
    %292 = vmatprep.subr.mxu0 0.0
    %293 = vmatpush1.msra.mxu0 %v269
    %294 = vmatprep.subr.mxu0 0.0
    %295 = vmatpush1.msra.mxu0 %v268
    %296 = vmatprep.subr.mxu0 0.0
    %297 = vmatpush1.msra.mxu0 %v267
    %298 = vmatprep.subr.mxu0 0.0
    %299 = vmatpush1.msra.mxu0 %v266
    %300 = vmatprep.subr.mxu0 0.0
    %301 = vmatpush1.msra.mxu0 %v265
    %302 = vmatprep.subr.mxu0 0.0
    %303 = vmatpush1.msra.mxu0 %v264
    %304 = vmatprep.subr.mxu0 0.0
    %305 = vmatpush1.msra.mxu0 %v263
    %306 = vmatprep.subr.mxu0 0.0
    %307 = vmatpush1.msra.mxu0 %v262
    %308 = vmatprep.subr.mxu0 0.0
    %309 = vmatpush1.msra.mxu0 %v261
    %310 = vmatprep.subr.mxu0 0.0
    %311 = vmatpush1.msra.mxu0 %v260
    %312 = vmatprep.subr.mxu0 0.0
    %313 = vmatpush1.msra.mxu0 %v259
    %314 = vmatprep.subr.mxu0 0.0
    %315 = vmatpush2.msra.mxu0 0.0
    %316 = vmatprep.subr.mxu0 0.0
    %317 = vmatpush2.msra.mxu0 0.0
    %318 = vmatprep.subr.mxu0 0.0
    %319 = vmatpush2.msra.mxu0 0.0
    %320 = vmatprep.subr.mxu0 0.0
    %321 = vmatpush2.msra.mxu0 0.0
    %322 = vmatprep.subr.mxu0 0.0
    %323 = vmatpush2.msra.mxu0 0.0
    %324 = vmatprep.subr.mxu0 0.0
    %325 = vmatpush2.msra.mxu0 0.0
    %326 = vmatprep.subr.mxu0 0.0
    %327 = vmatpush2.msra.mxu0 0.0
    %328 = vmatprep.subr.mxu0 0.0
    %329 = vmatpush2.msra.mxu0 0.0
    %330 = vmatprep.subr.mxu0 0.0
    %331 = vmatpush2.msra.mxu0 0.0
    %332 = vmatprep.subr.mxu0 0.0
    %333 = vmatpush2.msra.mxu0 0.0
    %334 = vmatprep.subr.mxu0 0.0
    %335 = vmatpush2.msra.mxu0 0.0
    %336 = vmatprep.subr.mxu0 0.0
    %337 = vmatpush2.msra.mxu0 0.0
    %338 = vmatprep.subr.mxu0 0.0
    %339 = vmatpush2.msra.mxu0 0.0
    %340 = vmatprep.subr.mxu0 0.0
    %341 = vmatpush2.msra.mxu0 0.0
    %342 = vmatprep.subr.mxu0 0.0
    %343 = vmatpush2.msra.mxu0 0.0
    %344 = vmatprep.subr.mxu0 0.0
    %345 = vmatpush2.msra.mxu0 0.0
    %346 = vmatprep.mubr.f32.mxu0 0.0
    %347 = vmatmul.mubr.f32.gmra.mxu0 %v258
    %v348 = vpop.f32.mrf.mxu0
    %v349 = vadd.f32 %v280, %v348
    %v350 = vpop.f32.mrf.mxu0
    %351 = vdwg.mxu0
    %352 = vst [vmem:[#allocation8] sm:$0xff] %v349
    // Predicated region
    $region42: #{dense_chain_net_forward.1} parent=1 // pred_check
      _
    $region43: #{dense_chain_net_forward.1} parent=1 // pred_check_branch
      %354 = sbr.rel (0) target = $region45
    $region44: #{dense_chain_net_forward.1} parent=1 // pred_region
      %s356 = ssub.s32 128, 128
      %357 = vsyncadd [#allocation4], %s356
      %s359 = sshll.u32 [#allocation8], 4
      %s360 = int_to_ptr.vmem [resolvable:$true] %s359
      %362 = dma.vmem_to_hbm [thread:$0]  %s360, 128, %s7, [#allocation4]
    $region45: #{dense_chain_net_forward.1} parent=1 // pred_fallthru
      _
    // Predicated region
    $region46: #{dense_chain_net_forward.1} parent=1 // pred_check
      _
    $region47: #{dense_chain_net_forward.1} parent=1 // pred_check_branch
      %364 = sbr.rel (0) target = $region49
    $region48: #{dense_chain_net_forward.1} parent=1 // pred_region
      %365 = dma.done [#allocation4], 128
    $region49: #{dense_chain_net_forward.1} parent=1 // pred_fallthru
      _
    %366 = vsyncpa [#allocation3], 1
    %367 = vsyncpa [#allocation6], 1
    %368 = vsyncpa [#allocation4], 1

</llo_original>
